<compile_context>
chip_gen: v6e
topology: v6e:2x2x1
jax: 0.10.0
libtpu: 0.0.40
codegen_flags: <defaults>
</compile_context>

<pallas_src>
import math
import jax
import jax.numpy as jnp
from jax import lax
from jax.experimental import pallas as pl
from jax.experimental.pallas import tpu as pltpu


def _scoring_kernel(h_ref, q_ref, o_ref, *, inv_sqrt_dk):
    # h_ref: (Bblk, L, D), q_ref: (Bblk, Lq, D), o_ref: (Bblk, L, Lq)
    h = h_ref[...]                               # (Bblk, L, D)
    # Fold the 1/sqrt(D) scale into q (Lq*D elems) instead of the (L, Lq) scores.
    q = q_ref[...] * inv_sqrt_dk                 # (Bblk, Lq, D)

    # Batched scaled dot product on the MXU, f32 accumulation, no explicit q.T.
    #   contract D (axis 2 of both), batch over axis 0  ->  (Bblk, L, Lq)
    s = lax.dot_general(
        h, q,
        dimension_numbers=(((2,), (2,)), ((0,), (0,))),
        preferred_element_type=jnp.float32,
    )

    # softmax over dim=1 of (B, L, Lq) == axis 1 of the (Bblk, L, Lq) tile.
    m = jnp.max(s, axis=1, keepdims=True)        # (Bblk, 1, Lq)
    e = jnp.exp(s - m)
    denom = jnp.sum(e, axis=1, keepdims=True)    # (Bblk, 1, Lq)
    alpha = e * pl.reciprocal(denom, approx=False)

    o_ref[...] = alpha.astype(o_ref.dtype)


def _choose_batch_block(B: int, max_bblk: int = 16) -> int:
    """Largest divisor of B that (a) keeps >= 2 grid steps when B >= 2 so the
    'parallel' axis can shard across v7x's two TensorCores, and (b) is capped
    so per-step VMEM stays small."""
    if B <= 1:
        return 1
    target = min(max_bblk, max(1, B // 2))
    for bblk in range(target, 0, -1):
        if B % bblk == 0:
            return bblk
    return 1


def scaled_dot_product_scoring(h: jax.Array, q: jax.Array) -> jax.Array:
    """h: (B, L, D), q: (B, Lq, D) -> alpha: (B, L, Lq), softmax over L."""
    B, L, D = h.shape
    Bq, Lq, Dq = q.shape
    assert B == Bq and D == Dq
    inv_sqrt_dk = 1.0 / math.sqrt(D)

    bblk = _choose_batch_block(B)
    grid = (B // bblk,)

    kernel = lambda h_ref, q_ref, o_ref: _scoring_kernel(
        h_ref, q_ref, o_ref, inv_sqrt_dk=inv_sqrt_dk
    )

    return pl.pallas_call(
        kernel,
        out_shape=jax.ShapeDtypeStruct((B, L, Lq), jnp.float32),
        grid_spec=pltpu.PrefetchScalarGridSpec(
            num_scalar_prefetch=0,
            grid=grid,
            in_specs=[
                pl.BlockSpec((bblk, L, D), lambda b: (b, 0, 0)),
                pl.BlockSpec((bblk, Lq, D), lambda b: (b, 0, 0)),
            ],
            out_specs=pl.BlockSpec((bblk, L, Lq), lambda b: (b, 0, 0)),
        ),
        compiler_params=pltpu.CompilerParams(
            dimension_semantics=("parallel",)
        ),
    )(h, q)


def _reference(h, q):
    s = jnp.einsum("bld,bkd->blk", h, q) / math.sqrt(h.shape[-1])
    return jax.nn.softmax(s, axis=1)


if __name__ == "__main__":
    # Config analog: max_sen_len = 8, key_value_query_vec_dim = 32
    B, L, Lq, D = 2, 8, 8, 32

    key = jax.random.PRNGKey(0)
    kh, kq = jax.random.split(key)
    h = jax.random.normal(kh, (B, L, D), dtype=jnp.float32)
    q = jax.random.normal(kq, (B, Lq, D), dtype=jnp.float32)

    alpha = scaled_dot_product_scoring(h, q)
    alpha = jax.block_until_ready(alpha)

    ref = _reference(h, q)
    assert alpha.shape == (B, L, Lq)
    assert jnp.allclose(alpha, ref, atol=1e-5, rtol=1e-5)

    print("KERNEL_OK")
</pallas_src>

<mosaic_0001>
module attributes {stable_mosaic.version = 11 : i64} {
  func.func @_lambda_(%arg0: i32, %arg1: memref<1x8x32xf32, #tpu.memory_space<vmem>>, %arg2: memref<1x8x32xf32, #tpu.memory_space<vmem>>, %arg3: memref<1x8x8xf32, #tpu.memory_space<vmem>>) attributes {dimension_semantics = [#tpu.dimension_semantics<parallel>], iteration_bounds = array<i64: 2>, scalar_prefetch = 0 : i64, scratch_operands = 0 : i64, tpu.core_type = #tpu.core_type<tc>, window_params = [{transform_indices = @transform_0, window_bounds = array<i64: 1, 8, 32>}, {transform_indices = @transform_1, window_bounds = array<i64: 1, 8, 32>}, {transform_indices = @transform_2, window_bounds = array<i64: 1, 8, 8>}]} {
    %c0 = arith.constant 0 : index
    %c0_0 = arith.constant 0 : index
    %c0_1 = arith.constant 0 : index
    %0 = vector.load %arg1[%c0, %c0_0, %c0_1] : memref<1x8x32xf32, #tpu.memory_space<vmem>>, vector<1x8x32xf32>
    %c0_2 = arith.constant 0 : index
    %c0_3 = arith.constant 0 : index
    %c0_4 = arith.constant 0 : index
    %1 = vector.load %arg2[%c0_2, %c0_3, %c0_4] : memref<1x8x32xf32, #tpu.memory_space<vmem>>, vector<1x8x32xf32>
    %cst = arith.constant 0.176776692 : f32
    %2 = vector.broadcast %cst : f32 to vector<1x8x32xf32>
    %3 = arith.mulf %1, %2 : vector<1x8x32xf32>
    %cst_5 = arith.constant dense<0.000000e+00> : vector<1x8x8xf32>
    %4 = tpu.matmul %0, %3, %cst_5 {dimension_numbers = #tpu.dot_dimension_numbers<[2], [2], [1], [1], [0, 0, 0, 1, 1, 1], [0], [0]>} : vector<1x8x32xf32>, vector<1x8x32xf32>, vector<1x8x8xf32> -> vector<1x8x8xf32>
    %cst_6 = arith.constant dense<0xFF800000> : vector<1x8xf32>
    %5 = vector.multi_reduction <maximumf>, %4, %cst_6 [1] : vector<1x8x8xf32> to vector<1x8xf32>
    %6 = vector.shape_cast %5 : vector<1x8xf32> to vector<1x1x8xf32>
    %7 = vector.broadcast %6 : vector<1x1x8xf32> to vector<1x8x8xf32>
    %8 = arith.subf %4, %7 : vector<1x8x8xf32>
    %9 = math.exp %8 : vector<1x8x8xf32>
    %cst_7 = arith.constant dense<0.000000e+00> : vector<1x8xf32>
    %10 = vector.multi_reduction <add>, %9, %cst_7 [1] : vector<1x8x8xf32> to vector<1x8xf32>
    %11 = vector.shape_cast %10 : vector<1x8xf32> to vector<1x1x8xf32>
    %12 = tpu.reciprocal %11 : vector<1x1x8xf32> -> vector<1x1x8xf32>
    %13 = vector.broadcast %12 : vector<1x1x8xf32> to vector<1x8x8xf32>
    %14 = arith.mulf %9, %13 : vector<1x8x8xf32>
    %c0_8 = arith.constant 0 : index
    %c0_9 = arith.constant 0 : index
    %c0_10 = arith.constant 0 : index
    %15 = vector.load %arg3[%c0_8, %c0_9, %c0_10] : memref<1x8x8xf32, #tpu.memory_space<vmem>>, vector<1x8x8xf32>
    tpu.vector_store %arg3[%c0_8, %c0_9, %c0_10], %14 {strides = array<i32>} : memref<1x8x8xf32, #tpu.memory_space<vmem>>, vector<1x8x8xf32>,
    return
  }
  func.func @transform_0(%arg0: i32) -> (i32, i32, i32) {
    %c0_i32 = arith.constant 0 : i32
    %c0_i32_0 = arith.constant 0 : i32
    %c0_i32_1 = arith.constant 0 : i32
    return %arg0, %c0_i32, %c0_i32_0 : i32, i32, i32
  }
  func.func @transform_1(%arg0: i32) -> (i32, i32, i32) {
    %c0_i32 = arith.constant 0 : i32
    %c0_i32_0 = arith.constant 0 : i32
    %c0_i32_1 = arith.constant 0 : i32
    return %arg0, %c0_i32, %c0_i32_0 : i32, i32, i32
  }
  func.func @transform_2(%arg0: i32) -> (i32, i32, i32) {
    %c0_i32 = arith.constant 0 : i32
    %c0_i32_0 = arith.constant 0 : i32
    %c0_i32_1 = arith.constant 0 : i32
    return %arg0, %c0_i32, %c0_i32_0 : i32, i32, i32
  }
}

</mosaic_0001>

<llo_original>
// kernel: tpu_custom_call.1
$region0: #{tpu_custom_call.1}
  #allocation0 [shape = 'u32[]', space=smem, size = 0x4, offset = 0x4, fixed_abs, tag = 'smem constant byte address 0x4 - core index']
  #allocation1 [shape = 'u32[144,128]{1,0:T(1,128)}', space=vmem, size = 0x12000, scoped, tag = 'internal scratch']
  %s0 = inlined_call_operand.hbm [shape: f32[2,8,32], index: 0, kind: input, shape index: {}]
  %s1 = inlined_call_operand.hbm [shape: f32[2,8,32], index: 1, kind: input, shape index: {}]
  %s2 = inlined_call_operand.hbm [shape: f32[2,8,8], index: 2, kind: output, shape index: {}]
  %s3 = sld [smem:[#allocation0]]
  $region49: #{tpu_custom_call.1} parent=0
    _
  %s5 = ssub.s32 1, %s3
  %s6 = scalar_select 0, %s5, %s3
  $region1: #{tpu_custom_call.1} parent=0
    #allocation2 [shape = 'u8[8192]{0}', space=vmem, size = 0x2000, scoped, tag = 'input window, operand 0']
    #allocation3 [shape = 's32[2]{0}', space=sflag, size = 0x8, scoped, tag = 'scoped memory for tpu_custom_call.1']
    #allocation4 [shape = 's32[2]{0}', space=sflag, size = 0x8, scoped, tag = 'scoped memory for tpu_custom_call.1']
    #allocation5 [shape = 'u8[8192]{0}', space=vmem, size = 0x2000, scoped, tag = 'input window, operand 1']
    #allocation6 [shape = 's32[2]{0}', space=sflag, size = 0x8, scoped, tag = 'scoped memory for tpu_custom_call.1']
    #allocation7 [shape = 'u8[8192]{0}', space=vmem, size = 0x2000, scoped, tag = 'output window, operand 0']
    %7 = vsyncpa [#allocation3], 0
    %s8 = scalar_lea.sflag [#allocation3], 1
    %9 = vsyncpa %s8, 0
    %10 = vsyncpa [#allocation6], 0
    %s11 = scalar_lea.sflag [#allocation6], 1
    %12 = vsyncpa %s11, 0
    %13 = vsyncpa [#allocation4], 0
    %s14 = scalar_lea.sflag [#allocation4], 1
    %15 = vsyncpa %s14, 0
    loop: start=0, step=1, limit=4
    $region2: #{tpu_custom_call.1} parent=1 // loop_pre_header
      _
    $region3: #{tpu_custom_call.1} parent=1 // loop_header
      %s17 = sphi 0, %s21
      %p18 = scmp.ge.s32.totalorder %s17, 4
      %s27 = sphi 0, %s29
      %s30 = sphi 0, %s27
      %s31 = sphi 0, %s30
      %s47 = sphi 0, %s31
      %s53 = sphi 0, %s55
      %s56 = sphi 0, %s53
      %s57 = sphi 0, %s56
      %s73 = sphi 0, %s57
      %s79 = sphi 0, %s81
      %s82 = sphi 0, %s79
      %s83 = sphi 0, %s82
      %s99 = sphi 0, %s83
    $region4: #{tpu_custom_call.1} parent=1 // loop_header_branch
      %20 = sbr.rel (%p18) target = $region8
    $region5: #{tpu_custom_call.1} parent=1 // loop_body
      %s22 = ssub.s32 %s17, 1
      %s23 = ssub.s32 %s17, 2
      %s24 = sadd.s32 %s17, 1
      %s25 = ssub.s32 %s17, %s24
      %p26 = scmp.eq.s32.totalorder %s25, 0
      %s28 = sadd.s32 %s27, 1
      %s29 = scalar_select %p26, %s27, %s28
      %p32 = pneg %p26
      %p33 = scmp.eq.s32.totalorder %s17, 1
      %p34 = por %p32, %p33
      %p35 = scmp.ne.s32.totalorder %s27, %s30
      %p36 = scmp.eq.s32.totalorder %s17, 0
      %p37 = por %p35, %p36
      %p38 = scmp.ne.s32.totalorder %s27, %s30
      %p39 = scmp.eq.s32.totalorder %s22, 1
      %p40 = por %p38, %p39
      %p41 = scmp.ne.s32.totalorder %s30, %s31
      %p42 = scmp.eq.s32.totalorder %s22, 0
      %p43 = por %p41, %p42
      %p44 = scmp.ne.s32.totalorder %s30, %s31
      %p45 = scmp.eq.s32.totalorder %s23, 1
      %p46 = por %p44, %p45
      %p48 = scmp.ne.s32.totalorder %s31, %s47
      %p49 = scmp.eq.s32.totalorder %s23, 0
      %p50 = por %p48, %p49
      %s51 = ssub.s32 %s17, %s24
      %p52 = scmp.eq.s32.totalorder %s51, 0
      %s54 = sadd.s32 %s53, 1
      %s55 = scalar_select %p52, %s53, %s54
      %p58 = pneg %p52
      %p59 = scmp.eq.s32.totalorder %s17, 1
      %p60 = por %p58, %p59
      %p61 = scmp.ne.s32.totalorder %s53, %s56
      %p62 = scmp.eq.s32.totalorder %s17, 0
      %p63 = por %p61, %p62
      %p64 = scmp.ne.s32.totalorder %s53, %s56
      %p65 = scmp.eq.s32.totalorder %s22, 1
      %p66 = por %p64, %p65
      %p67 = scmp.ne.s32.totalorder %s56, %s57
      %p68 = scmp.eq.s32.totalorder %s22, 0
      %p69 = por %p67, %p68
      %p70 = scmp.ne.s32.totalorder %s56, %s57
      %p71 = scmp.eq.s32.totalorder %s23, 1
      %p72 = por %p70, %p71
      %p74 = scmp.ne.s32.totalorder %s57, %s73
      %p75 = scmp.eq.s32.totalorder %s23, 0
      %p76 = por %p74, %p75
      %s77 = ssub.s32 %s17, %s24
      %p78 = scmp.eq.s32.totalorder %s77, 0
      %s80 = sadd.s32 %s79, 1
      %s81 = scalar_select %p78, %s79, %s80
      %p84 = pneg %p78
      %p85 = scmp.eq.s32.totalorder %s17, 1
      %p86 = por %p84, %p85
      %p87 = scmp.ne.s32.totalorder %s79, %s82
      %p88 = scmp.eq.s32.totalorder %s17, 0
      %p89 = por %p87, %p88
      %p90 = scmp.ne.s32.totalorder %s79, %s82
      %p91 = scmp.eq.s32.totalorder %s22, 1
      %p92 = por %p90, %p91
      %p93 = scmp.ne.s32.totalorder %s82, %s83
      %p94 = scmp.eq.s32.totalorder %s22, 0
      %p95 = por %p93, %p94
      %p96 = scmp.ne.s32.totalorder %s82, %s83
      %p97 = scmp.eq.s32.totalorder %s23, 1
      %p98 = por %p96, %p97
      %p100 = scmp.ne.s32.totalorder %s83, %s99
      %p101 = scmp.eq.s32.totalorder %s23, 0
      %p102 = por %p100, %p101
      %p103 = scmp.le.s32.totalorder 1, %s17
      %p104 = scmp.lt.s32.totalorder %s17, 3
      %p105 = pnand %p103, %p104
      %p106 = pneg %p105
      // Predicated region
      $region9: #{tpu_custom_call.1} parent=5 // pred_check
        _
      $region10: #{tpu_custom_call.1} parent=5 // pred_check_branch
        %108 = sbr.rel (%p105) target = $region12
      $region11: #{tpu_custom_call.1} parent=5 // pred_region
        %s109 = ssub.s32 %s17, 1
      $region12: #{tpu_custom_call.1} parent=5 // pred_fallthru
        _
      %p110 = scmp.lt.s32.totalorder %s17, 2
      // Predicated region
      $region13: #{tpu_custom_call.1} parent=5 // pred_check
        %p111 = pneg %p110
      $region14: #{tpu_custom_call.1} parent=5 // pred_check_branch
        %113 = sbr.rel (%p111) target = $region16
      $region15: #{tpu_custom_call.1} parent=5 // pred_region
        // Predicated region
        $region17: #{tpu_custom_call.1} parent=15 // pred_check
          %p114 = pneg %p37
        $region18: #{tpu_custom_call.1} parent=15 // pred_check_branch
          %116 = sbr.rel (%p114) target = $region20
        $region19: #{tpu_custom_call.1} parent=15 // pred_region
          %s117 = sand.u32 %s27, 1
          %s118 = scalar_lea.sflag [#allocation3], %s117
          %s119 = sand.u32 %s27, 1
          %s120 = smul.addr %s119, 8
          %s121 = scalar_lea.vmem [#allocation2], %s120
          %s123 = ssub.s32 128, 128
          %124 = vsyncadd %s118, %s123
          %s125 = smul.addr %s17, 128
          %s126 = scalar_lea.hbm %s0, %s125
          %s128 = sshll.u32 %s121, 4
          %s129 = int_to_ptr.vmem [resolvable:$true] %s128
          %131 = dma.hbm_to_vmem [thread:$0]  %s126, 128, %s129, %s118
        $region20: #{tpu_custom_call.1} parent=15 // pred_fallthru
          _
        // Predicated region
        $region21: #{tpu_custom_call.1} parent=15 // pred_check
          %p132 = pneg %p63
        $region22: #{tpu_custom_call.1} parent=15 // pred_check_branch
          %134 = sbr.rel (%p132) target = $region24
        $region23: #{tpu_custom_call.1} parent=15 // pred_region
          %s135 = sand.u32 %s53, 1
          %s136 = scalar_lea.sflag [#allocation6], %s135
          %s137 = sand.u32 %s53, 1
          %s138 = smul.addr %s137, 8
          %s139 = scalar_lea.vmem [#allocation5], %s138
          %s141 = ssub.s32 128, 128
          %142 = vsyncadd %s136, %s141
          %s143 = smul.addr %s17, 128
          %s144 = scalar_lea.hbm %s1, %s143
          %s146 = sshll.u32 %s139, 4
          %s147 = int_to_ptr.vmem [resolvable:$true] %s146
          %149 = dma.hbm_to_vmem [thread:$0]  %s144, 128, %s147, %s136
        $region24: #{tpu_custom_call.1} parent=15 // pred_fallthru
          _
      $region16: #{tpu_custom_call.1} parent=5 // pred_fallthru
        _
      %p150 = scmp.le.s32.totalorder 1, %s17
      %p151 = scmp.lt.s32.totalorder %s17, 3
      %p152 = pnand %p150, %p151
      %p153 = pneg %p152
      // Predicated region
      $region25: #{tpu_custom_call.1} parent=5 // pred_check
        _
      $region26: #{tpu_custom_call.1} parent=5 // pred_check_branch
        %155 = sbr.rel (%p152) target = $region28
      $region27: #{tpu_custom_call.1} parent=5 // pred_region
        %s156 = ssub.s32 %s17, 1
        %s157 = sand.u32 %s30, 1
        %s158 = scalar_lea.sflag [#allocation3], %s157
        %s159 = sand.u32 %s30, 1
        %s160 = smul.addr %s159, 8
        %s161 = scalar_lea.vmem [#allocation2], %s160
        // Predicated region
        $region29: #{tpu_custom_call.1} parent=27 // pred_check
          %p162 = pneg %p43
        $region30: #{tpu_custom_call.1} parent=27 // pred_check_branch
          %164 = sbr.rel (%p162) target = $region32
        $region31: #{tpu_custom_call.1} parent=27 // pred_region
          %165 = dma.done %s158, 128
        $region32: #{tpu_custom_call.1} parent=27 // pred_fallthru
          _
        %s166 = sand.u32 %s56, 1
        %s167 = scalar_lea.sflag [#allocation6], %s166
        %s168 = sand.u32 %s56, 1
        %s169 = smul.addr %s168, 8
        %s170 = scalar_lea.vmem [#allocation5], %s169
        // Predicated region
        $region33: #{tpu_custom_call.1} parent=27 // pred_check
          %p171 = pneg %p69
        $region34: #{tpu_custom_call.1} parent=27 // pred_check_branch
          %173 = sbr.rel (%p171) target = $region36
        $region35: #{tpu_custom_call.1} parent=27 // pred_region
          %174 = dma.done %s167, 128
        $region36: #{tpu_custom_call.1} parent=27 // pred_fallthru
          _
        %s175 = sand.u32 %s30, 1
        %s176 = scalar_lea.sflag [#allocation3], %s175
        %s177 = sand.u32 %s30, 1
        %s178 = smul.addr %s177, 8
        %s179 = scalar_lea.vmem [#allocation2], %s178
        %p180 = pneg %p43
        %p181 = pneg %p40
        %s182 = sand.u32 %s56, 1
        %s183 = scalar_lea.sflag [#allocation6], %s182
        %s184 = sand.u32 %s56, 1
        %s185 = smul.addr %s184, 8
        %s186 = scalar_lea.vmem [#allocation5], %s185
        %p187 = pneg %p69
        %p188 = pneg %p66
        %p189 = pneg %p95
        %p190 = pneg %p92
        %s191 = sand.u32 %s82, 1
        %s192 = scalar_lea.sflag [#allocation4], %s191
        %s193 = sand.u32 %s82, 1
        %s194 = smul.addr %s193, 8
        %s195 = scalar_lea.vmem [#allocation7], %s194
        %v196 = vld [vmem:[%s161] sm:$0xff]
        %v197 = vld [vmem:[%s170] sm:$0xff]
        %v198 = vmul.f32 %v197, 0.17677669
        %vm199 = vcmask 261120
        %v201 = vsel %vm199, %v196, 0
        %v204 = vsel %vm199, %v198, 0
        %206 = vmatprep.subr.mxu0 0.0
        %207 = vmatpush1.xpose.msra.mxu0 0.0
        %208 = vmatprep.subr.mxu0 0.0
        %209 = vmatpush1.xpose.msra.mxu0 0.0
        %210 = vmatprep.subr.mxu0 0.0
        %211 = vmatpush1.xpose.msra.mxu0 0.0
        %212 = vmatprep.subr.mxu0 0.0
        %213 = vmatpush1.xpose.msra.mxu0 0.0
        %214 = vmatprep.subr.mxu0 0.0
        %215 = vmatpush1.xpose.msra.mxu0 0.0
        %216 = vmatprep.subr.mxu0 0.0
        %217 = vmatpush1.xpose.msra.mxu0 0.0
        %218 = vmatprep.subr.mxu0 0.0
        %219 = vmatpush1.xpose.msra.mxu0 0.0
        %220 = vmatprep.subr.mxu0 0.0
        %221 = vmatpush1.xpose.msra.mxu0 0.0
        %222 = vmatprep.subr.mxu0 0.0
        %223 = vmatpush1.xpose.msra.mxu0 0.0
        %224 = vmatprep.subr.mxu0 0.0
        %225 = vmatpush1.xpose.msra.mxu0 0.0
        %226 = vmatprep.subr.mxu0 0.0
        %227 = vmatpush1.xpose.msra.mxu0 0.0
        %228 = vmatprep.subr.mxu0 0.0
        %229 = vmatpush1.xpose.msra.mxu0 0.0
        %230 = vmatprep.subr.mxu0 0.0
        %231 = vmatpush1.xpose.msra.mxu0 0.0
        %232 = vmatprep.subr.mxu0 0.0
        %233 = vmatpush1.xpose.msra.mxu0 0.0
        %234 = vmatprep.subr.mxu0 0.0
        %235 = vmatpush1.xpose.msra.mxu0 0.0
        %236 = vmatprep.subr.mxu0 0.0
        %237 = vmatpush1.xpose.msra.mxu0 %v204
        %238 = vmatprep.subr.mxu0 0.0
        %239 = vmatpush2.xpose.msra.mxu0 0.0
        %240 = vmatprep.subr.mxu0 0.0
        %241 = vmatpush2.xpose.msra.mxu0 0.0
        %242 = vmatprep.subr.mxu0 0.0
        %243 = vmatpush2.xpose.msra.mxu0 0.0
        %244 = vmatprep.subr.mxu0 0.0
        %245 = vmatpush2.xpose.msra.mxu0 0.0
        %246 = vmatprep.subr.mxu0 0.0
        %247 = vmatpush2.xpose.msra.mxu0 0.0
        %248 = vmatprep.subr.mxu0 0.0
        %249 = vmatpush2.xpose.msra.mxu0 0.0
        %250 = vmatprep.subr.mxu0 0.0
        %251 = vmatpush2.xpose.msra.mxu0 0.0
        %252 = vmatprep.subr.mxu0 0.0
        %253 = vmatpush2.xpose.msra.mxu0 0.0
        %254 = vmatprep.subr.mxu0 0.0
        %255 = vmatpush2.xpose.msra.mxu0 0.0
        %256 = vmatprep.subr.mxu0 0.0
        %257 = vmatpush2.xpose.msra.mxu0 0.0
        %258 = vmatprep.subr.mxu0 0.0
        %259 = vmatpush2.xpose.msra.mxu0 0.0
        %260 = vmatprep.subr.mxu0 0.0
        %261 = vmatpush2.xpose.msra.mxu0 0.0
        %262 = vmatprep.subr.mxu0 0.0
        %263 = vmatpush2.xpose.msra.mxu0 0.0
        %264 = vmatprep.subr.mxu0 0.0
        %265 = vmatpush2.xpose.msra.mxu0 0.0
        %266 = vmatprep.subr.mxu0 0.0
        %267 = vmatpush2.xpose.msra.mxu0 0.0
        %268 = vmatprep.subr.mxu0 0.0
        %269 = vmatpush2.xpose.msra.mxu0 0.0
        %270 = vmatprep.mubr.f32.mxu0 0.0
        %271 = vmatmul.mubr.f32.gmra.mxu0 %v201
        %v272 = vpop.f32.mrf.mxu0
        %v273 = vadd.f32 0.0, %v272
        %v274 = vpop.f32.mrf.mxu0
        %275 = vdwg.mxu0
        %vm276 = vcmask 64512
        %v277 = vsel %vm276, %v273, -inf
        %v278 = vrot.slane %v277, 4
        %v279 = vmax.f32 %v277, %v278
        %v280 = vrot.slane %v279, 2
        %v281 = vmax.f32 %v279, %v280
        %v282 = vrot.slane %v281, 1
        %v283 = vmax.f32 %v281, %v282
        %v284 = vsub.f32 %v273, %v283
        %v285 = vmul.f32 %v284, 1.442695
        %v286 = vpow.pop %v285
        %v287 = vsel %vm276, %v286, 0.0
        %v288 = vrot.slane %v287, 4
        %v289 = vadd.f32 %v287, %v288
        %v290 = vrot.slane %v289, 2
        %v291 = vadd.f32 %v289, %v290
        %v292 = vrot.slane %v291, 1
        %v293 = vadd.f32 %v291, %v292
        %v294 = vrcp.pop %v293
        %v295 = vmul.f32 %v286, %v294
        %296 = vst.msk [vmem:[%s195] sm:$0xff] %vm276, %v295
        %s297 = sand.u32 %s82, 1
        %s298 = scalar_lea.sflag [#allocation4], %s297
        %s299 = sand.u32 %s82, 1
        %s300 = smul.addr %s299, 8
        %s301 = scalar_lea.vmem [#allocation7], %s300
        // Predicated region
        $region37: #{tpu_custom_call.1} parent=27 // pred_check
          %p302 = pneg %p92
        $region38: #{tpu_custom_call.1} parent=27 // pred_check_branch
          %304 = sbr.rel (%p302) target = $region40
        $region39: #{tpu_custom_call.1} parent=27 // pred_region
          %s306 = ssub.s32 128, 128
          %307 = vsyncadd %s298, %s306
          %s308 = smul.addr %s22, 128
          %s309 = scalar_lea.hbm %s2, %s308
          %s311 = sshll.u32 %s301, 4
          %s312 = int_to_ptr.vmem [resolvable:$true] %s311
          %314 = dma.vmem_to_hbm [thread:$0]  %s312, 128, %s309, %s298
        $region40: #{tpu_custom_call.1} parent=27 // pred_fallthru
          _
      $region28: #{tpu_custom_call.1} parent=5 // pred_fallthru
        _
      %p315 = scmp.le.s32.totalorder 2, %s17
      // Predicated region
      $region41: #{tpu_custom_call.1} parent=5 // pred_check
        %p316 = pneg %p315
      $region42: #{tpu_custom_call.1} parent=5 // pred_check_branch
        %318 = sbr.rel (%p316) target = $region44
      $region43: #{tpu_custom_call.1} parent=5 // pred_region
        %s319 = ssub.s32 %s17, 2
        // Predicated region
        $region45: #{tpu_custom_call.1} parent=43 // pred_check
          %p320 = pneg %p98
        $region46: #{tpu_custom_call.1} parent=43 // pred_check_branch
          %322 = sbr.rel (%p320) target = $region48
        $region47: #{tpu_custom_call.1} parent=43 // pred_region
          %s323 = sand.u32 %s83, 1
          %s324 = scalar_lea.sflag [#allocation4], %s323
          %s325 = sand.u32 %s83, 1
          %s326 = smul.addr %s325, 8
          %s327 = scalar_lea.vmem [#allocation7], %s326
          %328 = dma.done %s324, 128
        $region48: #{tpu_custom_call.1} parent=43 // pred_fallthru
          _
      $region44: #{tpu_custom_call.1} parent=5 // pred_fallthru
        _
    $region6: #{tpu_custom_call.1} parent=1 // loop_footer
      %s21 = sadd.s32 1, %s17
    $region7: #{tpu_custom_call.1} parent=1 // loop_footer_branch
      %16 = sbr.rel target = $region3
    $region8: #{tpu_custom_call.1} parent=1 // loop_exit
      _
    %329 = vsyncpa [#allocation3], 1
    %s330 = scalar_lea.sflag [#allocation3], 1
    %331 = vsyncpa %s330, 1
    %332 = vsyncpa [#allocation6], 1
    %s333 = scalar_lea.sflag [#allocation6], 1
    %334 = vsyncpa %s333, 1
    %335 = vsyncpa [#allocation4], 1
    %s336 = scalar_lea.sflag [#allocation4], 1
    %337 = vsyncpa %s336, 1

</llo_original>
